<compile_context>
chip_gen: v7x
topology: tpu7x:2x2x1
jax: 0.10.0
libtpu: 0.0.40
codegen_flags: <defaults>
</compile_context>

<pallas_src>
import functools

import jax
import jax.numpy as jnp
from jax.experimental import pallas as pl
from jax.experimental.pallas import tpu as pltpu


def _round_up(a, b):
    return (a + b - 1) // b * b


def _ceil_div(a, b):
    return (a + b - 1) // b


def _tail_kernel(x_ref, t_ref, wx_ref, wt_ref, b_ref, o_ref, acc_ref,
                 *, hw, bhw, mask_spatial, unroll_fc):
    # x_ref : (bn, C, bhw)   lane-dense activation slice
    # t_ref : (bn, 1)        time scalar per batch row
    # wx_ref: (C, O_pad)     fc1 weight (pooled part), pre-scaled by 1/(H*W)
    # wt_ref: (1, O_pad)     fc1 weight (time part)
    # b_ref : (1, O_pad)     bias
    # o_ref : (bn, O_pad)    output tile (resident across the spatial axis)
    # acc_ref: (bn, C) f32   pooled-sum accumulator (VMEM scratch)
    j = pl.program_id(1)

    @pl.when(j == 0)
    def _():
        acc_ref[...] = jnp.zeros_like(acc_ref)

    x = x_ref[...]
    if mask_spatial:
        # Last spatial tile is a clipped DMA (no wrapper pad) -> zero the lanes
        # that lie beyond the true H*W extent before accumulating.
        lane = jax.lax.broadcasted_iota(jnp.int32, x.shape, 2)
        x = jnp.where(j * bhw + lane < hw, x, jnp.zeros_like(x))

    # Global-average-pool numerator: accumulate the spatial sum in f32.
    acc_ref[...] += jnp.sum(x, axis=-1, dtype=jnp.float32)

    @pl.when(j == pl.num_programs(1) - 1)
    def _():
        pooled = acc_ref[...]                                      # (bn, C); 1/HW folded into wx
        out = t_ref[...].astype(jnp.float32) * wt_ref[...] + b_ref[...]
        if unroll_fc:
            # Tiny C: a handful of VPU broadcast-FMAs beats a degenerate K=C MXU matmul.
            wx = wx_ref[...]
            for c in range(pooled.shape[1]):
                out = out + pooled[:, c:c + 1] * wx[c:c + 1, :]
        else:
            out = out + jnp.dot(pooled, wx_ref[...],
                                preferred_element_type=jnp.float32)
        o_ref[...] = out.astype(o_ref.dtype)


def tail_module_forward(x, t, weight, bias, *,
                        spatial_budget_bytes=6 << 20,   # per input buffer (padded accounting)
                        max_block_n=512):
    """Pallas implementation of TailModule.forward.

    x:      (N, C, H, W)
    t:      (N, 1)
    weight: (O, C+1)   torch Linear layout [out_features, in_features]
    bias:   (O,)
    returns (N, O) float32
    """
    N, C, H, W = x.shape
    O = weight.shape[0]
    assert weight.shape == (O, C + 1)
    HW = H * W
    itemsize = jnp.dtype(x.dtype).itemsize
    sublane_pack = max(8, 32 // itemsize)          # f32: 8, bf16: 16, int8: 32
    C_sub = _round_up(C, sublane_pack)             # sublane-padded channel count

    # Free reshape to lane-dense (N, C, HW); NO padding / extra HBM pass.
    x3d = x.reshape(N, C, HW)

    # ---- spatial tiling (lanes), accounting for sublane + lane padding ------
    HW_lanes = _round_up(HW, 128)
    bytes_per_row_full = C_sub * HW_lanes * itemsize       # one batch row, full HW, padded
    if spatial_budget_bytes >= 8 * bytes_per_row_full:
        # Whole spatial extent per grid step; grow the batch tile instead.
        bhw = HW                                           # equals full dim -> always legal
        n_spatial = 1
        row_budget_rows = spatial_budget_bytes // bytes_per_row_full
    else:
        max_bhw = max(128,
                      (spatial_budget_bytes // (8 * C_sub * itemsize)) // 128 * 128)
        n_spatial = _ceil_div(HW, max_bhw)
        # Balance tiles so a barely-over-budget HW does not double the streamed volume.
        bhw = min(max_bhw, _round_up(_ceil_div(HW, n_spatial), 128))
        n_spatial = _ceil_div(HW, bhw)
        row_budget_rows = 8

    # ---- batch tiling --------------------------------------------------------
    if N <= 8:
        bn = N                                             # full dim -> legal, no partial block
    else:
        bn = min(_round_up(N, 8), max_block_n, max(8, (row_budget_rows // 8) * 8))
        if _ceil_div(N, bn) == 1:
            # Give v7x's two TensorCores at least two steps on the parallel axis.
            bn = max(8, _round_up(_ceil_div(N, 2), 8))
    n_batch = _ceil_div(N, bn)
    mask_spatial = (n_spatial > 1) and (HW % bhw != 0)

    # ---- weights: split, fold pooling scale, pad lanes to 128 ----------------
    O_pad = _round_up(O, 128)
    wx = (weight[:, :C].T.astype(jnp.float32)) / jnp.float32(HW)   # (C, O)
    wt = weight[:, C:].T.astype(jnp.float32)                       # (1, O)
    b = bias.reshape(1, O).astype(jnp.float32)                     # (1, O)
    if O_pad != O:
        wx = jnp.pad(wx, ((0, 0), (0, O_pad - O)))
        wt = jnp.pad(wt, ((0, 0), (0, O_pad - O)))
        b = jnp.pad(b, ((0, 0), (0, O_pad - O)))

    # ---- VMEM accounting (double-buffered inputs, padded layouts) ------------
    x_tile_bytes = bn * C_sub * _round_up(bhw, 128) * itemsize
    vmem_est = (2 * x_tile_bytes
                + 2 * _round_up(bn, 8) * 128 * 4               # t tiles (lane-padded)
                + 2 * _round_up(C, 8) * O_pad * 4              # wx
                + 4 * 8 * O_pad * 4                            # wt + b
                + 2 * _round_up(bn, 8) * O_pad * 4             # output tiles
                + _round_up(bn, 8) * 128 * 4)                  # acc scratch
    vmem_limit = int(max(vmem_est + (4 << 20), 16 << 20))

    cost = pl.CostEstimate(
        flops=int(N * C * HW + 2 * N * C * O),                 # reduce adds + tiny linear
        transcendentals=0,
        bytes_accessed=int(N * C * HW * itemsize
                           + N * jnp.dtype(t.dtype).itemsize
                           + (C + 2) * O_pad * 4
                           + N * O_pad * 4),
    )

    kernel = functools.partial(_tail_kernel, hw=HW, bhw=bhw,
                               mask_spatial=mask_spatial, unroll_fc=(C <= 8))

    out = pl.pallas_call(
        kernel,
        out_shape=jax.ShapeDtypeStruct((N, O_pad), jnp.float32),
        grid_spec=pltpu.PrefetchScalarGridSpec(
            num_scalar_prefetch=0,
            grid=(n_batch, n_spatial),
            in_specs=[
                pl.BlockSpec((bn, C, bhw), lambda i, j: (i, 0, j)),
                pl.BlockSpec((bn, 1), lambda i, j: (i, 0)),
                pl.BlockSpec((C, O_pad), lambda i, j: (0, 0)),
                pl.BlockSpec((1, O_pad), lambda i, j: (0, 0)),
                pl.BlockSpec((1, O_pad), lambda i, j: (0, 0)),
            ],
            out_specs=pl.BlockSpec((bn, O_pad), lambda i, j: (i, 0)),
            scratch_shapes=[pltpu.VMEM((bn, C), jnp.float32)],
        ),
        compiler_params=pltpu.CompilerParams(
            dimension_semantics=("parallel", "arbitrary"),
            vmem_limit_bytes=vmem_limit),
        cost_estimate=cost,
    )(x3d, t, wx, wt, b)

    return out[:, :O]


def reference_forward(x, t, weight, bias):
    pooled = jnp.mean(x.astype(jnp.float32), axis=(2, 3))   # (N, C)
    cat = jnp.concatenate([pooled, t.astype(jnp.float32)], axis=1)
    return cat @ weight.astype(jnp.float32).T + bias.astype(jnp.float32)


def _make_inputs(key, N, C, H, W, O):
    kx, kt, kw, kb = jax.random.split(key, 4)
    x = jax.random.normal(kx, (N, C, H, W), dtype=jnp.float32)
    t = jax.random.normal(kt, (N, 1), dtype=jnp.float32)
    fan_in = C + 1
    bound = 1.0 / jnp.sqrt(jnp.float32(fan_in))
    weight = jax.random.uniform(kw, (O, fan_in), minval=-bound, maxval=bound,
                                dtype=jnp.float32)
    bias = jax.random.uniform(kb, (O,), minval=-bound, maxval=bound,
                              dtype=jnp.float32)
    return x, t, weight, bias


if __name__ == "__main__":
    key = jax.random.PRNGKey(0)
    k1, k2 = jax.random.split(key)

    # Case 1: small shapes consistent with the module (n_channels=4, n_outputs=8).
    N, C, H, W, O = 2, 4, 16, 16, 8
    x, t, weight, bias = _make_inputs(k1, N, C, H, W, O)
    out = jax.block_until_ready(tail_module_forward(x, t, weight, bias))
    ref = reference_forward(x, t, weight, bias)
    assert out.shape == (N, O)
    assert jnp.allclose(out, ref, atol=1e-5, rtol=1e-5), (out, ref)

    # Case 2: ragged batch (partial batch block) + ragged spatial extent
    # (masked final spatial tile), forced by a tiny spatial budget.
    N2, C2, H2, W2, O2 = 10, 4, 12, 12, 8
    x2, t2, w2, b2 = _make_inputs(k2, N2, C2, H2, W2, O2)
    out2 = jax.block_until_ready(
        tail_module_forward(x2, t2, w2, b2, spatial_budget_bytes=32 * 1024))
    ref2 = reference_forward(x2, t2, w2, b2)
    assert out2.shape == (N2, O2)
    assert jnp.allclose(out2, ref2, atol=1e-5, rtol=1e-5), (out2, ref2)

    print("KERNEL_OK")
</pallas_src>

<mosaic_0001>
module attributes {stable_mosaic.version = 11 : i64} {
  func.func @_tail_kernel(%arg0: i32, %arg1: i32, %arg2: memref<2x4x256xf32, #tpu.memory_space<vmem>>, %arg3: memref<2x1xf32, #tpu.memory_space<vmem>>, %arg4: memref<4x128xf32, #tpu.memory_space<vmem>>, %arg5: memref<1x128xf32, #tpu.memory_space<vmem>>, %arg6: memref<1x128xf32, #tpu.memory_space<vmem>>, %arg7: memref<2x128xf32, #tpu.memory_space<vmem>>, %arg8: memref<2x4xf32, #tpu.memory_space<vmem>>) attributes {dimension_semantics = [#tpu.dimension_semantics<parallel>, #tpu.dimension_semantics<arbitrary>], iteration_bounds = array<i64: 1, 1>, scalar_prefetch = 0 : i64, scratch_operands = 1 : i64, tpu.core_type = #tpu.core_type<tc>, window_params = [{transform_indices = @transform_0, window_bounds = array<i64: 2, 4, 256>}, {transform_indices = @transform_1, window_bounds = array<i64: 2, 1>}, {pipeline_mode = #tpu.pipeline_mode<synchronous>, transform_indices = @transform_2, window_bounds = array<i64: 4, 128>}, {pipeline_mode = #tpu.pipeline_mode<synchronous>, transform_indices = @transform_3, window_bounds = array<i64: 1, 128>}, {pipeline_mode = #tpu.pipeline_mode<synchronous>, transform_indices = @transform_4, window_bounds = array<i64: 1, 128>}, {transform_indices = @transform_5, window_bounds = array<i64: 2, 128>}]} {
    %c0_i32 = arith.constant 0 : i32
    %0 = arith.cmpi eq, %arg1, %c0_i32 : i32
    %1 = arith.extui %0 : i1 to i32
    %c0_i32_0 = arith.constant 0 : i32
    %2 = arith.cmpi ne, %1, %c0_i32_0 : i32
    scf.if %2 {
      %cst_9 = arith.constant 0.000000e+00 : f32
      %11 = vector.broadcast %cst_9 : f32 to vector<2x4xf32>
      %c0_10 = arith.constant 0 : index
      %c0_11 = arith.constant 0 : index
      %12 = vector.load %arg8[%c0_10, %c0_11] : memref<2x4xf32, #tpu.memory_space<vmem>>, vector<2x4xf32>
      tpu.vector_store %arg8[%c0_10, %c0_11], %11 {strides = array<i32>} : memref<2x4xf32, #tpu.memory_space<vmem>>, vector<2x4xf32>,
    } else {
    }
    %c0 = arith.constant 0 : index
    %c0_1 = arith.constant 0 : index
    %c0_2 = arith.constant 0 : index
    %3 = vector.load %arg2[%c0, %c0_1, %c0_2] : memref<2x4x256xf32, #tpu.memory_space<vmem>>, vector<2x4x256xf32>
    %c0_3 = arith.constant 0 : index
    %c0_4 = arith.constant 0 : index
    %4 = vector.load %arg8[%c0_3, %c0_4] : memref<2x4xf32, #tpu.memory_space<vmem>>, vector<2x4xf32>
    %cst = arith.constant dense<0.000000e+00> : vector<2x4xf32>
    %5 = vector.multi_reduction <add>, %3, %cst [2] : vector<2x4x256xf32> to vector<2x4xf32>
    %6 = arith.addf %4, %5 : vector<2x4xf32>
    %c0_5 = arith.constant 0 : index
    %c0_6 = arith.constant 0 : index
    %7 = vector.load %arg8[%c0_5, %c0_6] : memref<2x4xf32, #tpu.memory_space<vmem>>, vector<2x4xf32>
    tpu.vector_store %arg8[%c0_5, %c0_6], %6 {strides = array<i32>} : memref<2x4xf32, #tpu.memory_space<vmem>>, vector<2x4xf32>,
    %c0_i32_7 = arith.constant 0 : i32
    %8 = arith.cmpi eq, %arg1, %c0_i32_7 : i32
    %9 = arith.extui %8 : i1 to i32
    %c0_i32_8 = arith.constant 0 : i32
    %10 = arith.cmpi ne, %9, %c0_i32_8 : i32
    scf.if %10 {
      %c0_9 = arith.constant 0 : index
      %c0_10 = arith.constant 0 : index
      %11 = vector.load %arg8[%c0_9, %c0_10] : memref<2x4xf32, #tpu.memory_space<vmem>>, vector<2x4xf32>
      %c0_11 = arith.constant 0 : index
      %c0_12 = arith.constant 0 : index
      %12 = vector.load %arg3[%c0_11, %c0_12] : memref<2x1xf32, #tpu.memory_space<vmem>>, vector<2x1xf32>
      %c0_13 = arith.constant 0 : index
      %c0_14 = arith.constant 0 : index
      %13 = vector.load %arg5[%c0_13, %c0_14] : memref<1x128xf32, #tpu.memory_space<vmem>>, vector<1x128xf32>
      %14 = vector.broadcast %12 : vector<2x1xf32> to vector<2x128xf32>
      %15 = vector.broadcast %13 : vector<1x128xf32> to vector<2x128xf32>
      %16 = arith.mulf %14, %15 : vector<2x128xf32>
      %c0_15 = arith.constant 0 : index
      %c0_16 = arith.constant 0 : index
      %17 = vector.load %arg6[%c0_15, %c0_16] : memref<1x128xf32, #tpu.memory_space<vmem>>, vector<1x128xf32>
      %18 = vector.broadcast %17 : vector<1x128xf32> to vector<2x128xf32>
      %19 = arith.addf %16, %18 : vector<2x128xf32>
      %c0_17 = arith.constant 0 : index
      %c0_18 = arith.constant 0 : index
      %20 = vector.load %arg4[%c0_17, %c0_18] : memref<4x128xf32, #tpu.memory_space<vmem>>, vector<4x128xf32>
      %21 = vector.extract_strided_slice %11 {offsets = [0, 0], sizes = [2, 1], strides = [1, 1]} : vector<2x4xf32> to vector<2x1xf32>
      %22 = vector.extract_strided_slice %20 {offsets = [0, 0], sizes = [1, 128], strides = [1, 1]} : vector<4x128xf32> to vector<1x128xf32>
      %23 = vector.broadcast %21 : vector<2x1xf32> to vector<2x128xf32>
      %24 = vector.broadcast %22 : vector<1x128xf32> to vector<2x128xf32>
      %25 = arith.mulf %23, %24 : vector<2x128xf32>
      %26 = arith.addf %19, %25 : vector<2x128xf32>
      %27 = vector.extract_strided_slice %11 {offsets = [0, 1], sizes = [2, 1], strides = [1, 1]} : vector<2x4xf32> to vector<2x1xf32>
      %28 = vector.extract_strided_slice %20 {offsets = [1, 0], sizes = [1, 128], strides = [1, 1]} : vector<4x128xf32> to vector<1x128xf32>
      %29 = vector.broadcast %27 : vector<2x1xf32> to vector<2x128xf32>
      %30 = vector.broadcast %28 : vector<1x128xf32> to vector<2x128xf32>
      %31 = arith.mulf %29, %30 : vector<2x128xf32>
      %32 = arith.addf %26, %31 : vector<2x128xf32>
      %33 = vector.extract_strided_slice %11 {offsets = [0, 2], sizes = [2, 1], strides = [1, 1]} : vector<2x4xf32> to vector<2x1xf32>
      %34 = vector.extract_strided_slice %20 {offsets = [2, 0], sizes = [1, 128], strides = [1, 1]} : vector<4x128xf32> to vector<1x128xf32>
      %35 = vector.broadcast %33 : vector<2x1xf32> to vector<2x128xf32>
      %36 = vector.broadcast %34 : vector<1x128xf32> to vector<2x128xf32>
      %37 = arith.mulf %35, %36 : vector<2x128xf32>
      %38 = arith.addf %32, %37 : vector<2x128xf32>
      %39 = vector.extract_strided_slice %11 {offsets = [0, 3], sizes = [2, 1], strides = [1, 1]} : vector<2x4xf32> to vector<2x1xf32>
      %40 = vector.extract_strided_slice %20 {offsets = [3, 0], sizes = [1, 128], strides = [1, 1]} : vector<4x128xf32> to vector<1x128xf32>
      %41 = vector.broadcast %39 : vector<2x1xf32> to vector<2x128xf32>
      %42 = vector.broadcast %40 : vector<1x128xf32> to vector<2x128xf32>
      %43 = arith.mulf %41, %42 : vector<2x128xf32>
      %44 = arith.addf %38, %43 : vector<2x128xf32>
      %c0_19 = arith.constant 0 : index
      %c0_20 = arith.constant 0 : index
      %45 = vector.load %arg7[%c0_19, %c0_20] : memref<2x128xf32, #tpu.memory_space<vmem>>, vector<2x128xf32>
      tpu.vector_store %arg7[%c0_19, %c0_20], %44 {strides = array<i32>} : memref<2x128xf32, #tpu.memory_space<vmem>>, vector<2x128xf32>,
    } else {
    }
    return
  }
  func.func @transform_0(%arg0: i32, %arg1: i32) -> (i32, i32, i32) {
    %c0_i32 = arith.constant 0 : i32
    %c0_i32_0 = arith.constant 0 : i32
    return %arg0, %c0_i32, %arg1 : i32, i32, i32
  }
  func.func @transform_1(%arg0: i32, %arg1: i32) -> (i32, i32) {
    %c0_i32 = arith.constant 0 : i32
    %c0_i32_0 = arith.constant 0 : i32
    return %arg0, %c0_i32 : i32, i32
  }
  func.func @transform_2(%arg0: i32, %arg1: i32) -> (i32, i32) {
    %c0_i32 = arith.constant 0 : i32
    %c0_i32_0 = arith.constant 0 : i32
    %c0_i32_1 = arith.constant 0 : i32
    return %c0_i32, %c0_i32_0 : i32, i32
  }
  func.func @transform_3(%arg0: i32, %arg1: i32) -> (i32, i32) {
    %c0_i32 = arith.constant 0 : i32
    %c0_i32_0 = arith.constant 0 : i32
    %c0_i32_1 = arith.constant 0 : i32
    return %c0_i32, %c0_i32_0 : i32, i32
  }
  func.func @transform_4(%arg0: i32, %arg1: i32) -> (i32, i32) {
    %c0_i32 = arith.constant 0 : i32
    %c0_i32_0 = arith.constant 0 : i32
    %c0_i32_1 = arith.constant 0 : i32
    return %c0_i32, %c0_i32_0 : i32, i32
  }
  func.func @transform_5(%arg0: i32, %arg1: i32) -> (i32, i32) {
    %c0_i32 = arith.constant 0 : i32
    %c0_i32_0 = arith.constant 0 : i32
    return %arg0, %c0_i32 : i32, i32
  }
}

</mosaic_0001>

<llo_original>
// kernel: tpu_custom_call.1
$region0: #{tpu_custom_call.1}
  #allocation0 [shape = 'u32[]', space=smem, size = 0x4, offset = 0x4, fixed_abs, tag = 'smem constant byte address 0x4 - core index']
  #allocation1 [shape = 'u32[144,128]{1,0:T(1,128)}', space=vmem, size = 0x12000, scoped, tag = 'internal scratch']
  #allocation2 [shape = 'f32[2,4]{1,0:T(2,128)}', space=vmem, size = 0x400, scoped, tag = 'scratch operand']
  %s0 = inlined_call_operand.hbm [shape: f32[2,4,256], index: 0, kind: input, shape index: {}]
  %s1 = inlined_call_operand.vmem [shape: f32[2,1], index: 1, kind: input, shape index: {}]
  %s2 = inlined_call_operand.vmem [shape: f32[4,128], index: 2, kind: input, shape index: {}]
  %s3 = inlined_call_operand.vmem [shape: f32[1,128], index: 3, kind: input, shape index: {}]
  %s4 = inlined_call_operand.vmem [shape: f32[1,128], index: 4, kind: input, shape index: {}]
  %s5 = inlined_call_operand.hbm [shape: f32[2,128], index: 5, kind: output, shape index: {}]
  %s6 = sld [smem:[#allocation0]]
  $region42: #{tpu_custom_call.1} parent=0
    _
  %s8 = ssub.s32 1, %s6
  %s9 = scalar_select 0, %s8, %s6
  $region1: #{tpu_custom_call.1} parent=0
    #allocation3 [shape = 'u8[8192]{0}', space=vmem, size = 0x2000, scoped, tag = 'input window, operand 0, single buffered']
    #allocation4 [shape = 's32[1]{0}', space=sflag, size = 0x4, scoped, tag = 'scoped memory for tpu_custom_call.1']
    #allocation5 [shape = 's32[1]{0}', space=sflag, size = 0x4, scoped, tag = 'scoped memory for tpu_custom_call.1']
    #allocation6 [shape = 'u8[1024]{0}', space=vmem, size = 0x400, scoped, tag = 'output window, operand 0, single buffered']
    %10 = vsyncpa [#allocation4], 0
    %11 = vsyncpa [#allocation5], 0
    // Predicated region
    $region2: #{tpu_custom_call.1} parent=1 // pred_check
      _
    $region3: #{tpu_custom_call.1} parent=1 // pred_check_branch
      %13 = sbr.rel (0) target = $region5
    $region4: #{tpu_custom_call.1} parent=1 // pred_region
      %s15 = ssub.s32 256, 256
      %16 = vsyncadd [#allocation4], %s15
      %s17 = sshll.u32 [#allocation3], 4
      %s18 = int_to_ptr.vmem [resolvable:$true] %s17
      %23 = dma.hbm_to_vmem [thread:$0]  %s0, 256, %s18, [#allocation4], 128, 128, 8
    $region5: #{tpu_custom_call.1} parent=1 // pred_fallthru
      _
    // Predicated region
    $region6: #{tpu_custom_call.1} parent=1 // pred_check
      _
    $region7: #{tpu_custom_call.1} parent=1 // pred_check_branch
      %25 = sbr.rel (0) target = $region9
    $region8: #{tpu_custom_call.1} parent=1 // pred_region
      _
    $region9: #{tpu_custom_call.1} parent=1 // pred_fallthru
      _
    // Predicated region
    $region10: #{tpu_custom_call.1} parent=1 // pred_check
      _
    $region11: #{tpu_custom_call.1} parent=1 // pred_check_branch
      %27 = sbr.rel (0) target = $region13
    $region12: #{tpu_custom_call.1} parent=1 // pred_region
      _
    $region13: #{tpu_custom_call.1} parent=1 // pred_fallthru
      _
    // Predicated region
    $region14: #{tpu_custom_call.1} parent=1 // pred_check
      _
    $region15: #{tpu_custom_call.1} parent=1 // pred_check_branch
      %29 = sbr.rel (0) target = $region17
    $region16: #{tpu_custom_call.1} parent=1 // pred_region
      _
    $region17: #{tpu_custom_call.1} parent=1 // pred_fallthru
      _
    // Predicated region
    $region18: #{tpu_custom_call.1} parent=1 // pred_check
      _
    $region19: #{tpu_custom_call.1} parent=1 // pred_check_branch
      %31 = sbr.rel (0) target = $region21
    $region20: #{tpu_custom_call.1} parent=1 // pred_region
      _
    $region21: #{tpu_custom_call.1} parent=1 // pred_fallthru
      _
    // Predicated region
    $region22: #{tpu_custom_call.1} parent=1 // pred_check
      _
    $region23: #{tpu_custom_call.1} parent=1 // pred_check_branch
      %33 = sbr.rel (0) target = $region25
    $region24: #{tpu_custom_call.1} parent=1 // pred_region
      %34 = dma.done [#allocation4], 256
    $region25: #{tpu_custom_call.1} parent=1 // pred_fallthru
      _
    %p35 = scmp.eq.s32.totalorder 0, 0
    // Predicated region
    $region26: #{tpu_custom_call.1} parent=1 // pred_check
      %p36 = pneg %p35
    $region27: #{tpu_custom_call.1} parent=1 // pred_check_branch
      %38 = sbr.rel (%p36) target = $region29
    $region28: #{tpu_custom_call.1} parent=1 // pred_region
      %vm39 = vcmask 25600
      %40 = vst.msk [vmem:[#allocation2] sm:$0x3] %vm39, 0.0
    $region29: #{tpu_custom_call.1} parent=1 // pred_fallthru
      _
    %v41 = vld [vmem:[#allocation3] sm:$0xff]
    %v42 = vld [vmem:[#allocation3 + $0x8] sm:$0xff]
    %v43 = vld [vmem:[#allocation2] sm:$0x3]
    %v46 = vcombine.high %v41, %v41
    %v47 = vcombine.high %v42, %v42
    %vm50 = vcmask 1043456
    %v51 = vsel %vm50, %v41, 0.0
    %v52 = vsel %vm50, %v46, 0.0
    %v53 = vadd.f32 %v51, %v52
    %54 = vadd.xlane.f32.xlu0 %v53
    %v55 = vpop.xlane.xlu0 %54
    %v56 = vsel %vm50, %v42, 0.0
    %v57 = vsel %vm50, %v47, 0.0
    %v58 = vadd.f32 %v56, %v57
    %59 = vadd.xlane.f32.xlu0 %v58
    %v60 = vpop.xlane.xlu0 %59
    %v63 = vlaneseq
    %v64 = vand.u32 %v63, 127
    %v65 = vlaneseq
    %v66 = vshrl.u32 %v65, 7
    %v67 = vsub.s32 %v64, %v66
    %v68 = vrot.slane %v55, %v67
    %v69 = vlaneseq
    %v70 = vshrl.u32 %v69, 7
    %v71 = vsub.s32 %v64, %v70
    %v72 = vrot.slane %v60, %v71
    %vm73 = vcmask 1041409
    %v74 = vsel %vm73, %v72, %v68
    %v76 = vadd.f32 %v43, %v74
    %vm77 = vcmask 25600
    %78 = vst.msk [vmem:[#allocation2] sm:$0x3] %vm77, %v76
    // Predicated region
    $region30: #{tpu_custom_call.1} parent=1 // pred_check
      %p79 = pneg %p35
    $region31: #{tpu_custom_call.1} parent=1 // pred_check_branch
      %81 = sbr.rel (%p79) target = $region33
    $region32: #{tpu_custom_call.1} parent=1 // pred_region
      %v82 = vld [vmem:[#allocation2] sm:$0x3]
      %v83 = vld [vmem:[%s1] sm:$0x3]
      %v84 = vld [vmem:[%s3] sm:$0x1]
      %86 = vset.pattern.permute.xlu0 0
      %87 = vperm.xlu0 %86, %v83
      %v88 = vpop.permute.xlu0 %87
      %v91 = vlaneseq
      %v92 = vshrl.u32 %v91, 7
      %v93 = vsub.s32 0, %v92
      %v94 = vrot.slane %v84, %v93
      %v96 = vmul.f32 %v88, %v94
      %v97 = vld [vmem:[%s4] sm:$0x1]
      %v99 = vlaneseq
      %v100 = vshrl.u32 %v99, 7
      %v101 = vsub.s32 0, %v100
      %v102 = vrot.slane %v97, %v101
      %v104 = vadd.f32 %v96, %v102
      %v105 = vld [vmem:[%s2] sm:$0xf]
      %107 = vset.pattern.permute.xlu0 0
      %108 = vperm.xlu0 %107, %v82
      %v109 = vpop.permute.xlu0 %108
      %v111 = vlaneseq
      %v112 = vshrl.u32 %v111, 7
      %v113 = vsub.s32 0, %v112
      %v114 = vrot.slane %v105, %v113
      %v115 = vmul.f32 %v109, %v114
      %v116 = vadd.f32 %v104, %v115
      %117 = vset.pattern.permute.xlu0 1
      %118 = vperm.xlu0 %117, %v82
      %v119 = vpop.permute.xlu0 %118
      %v121 = vlaneseq
      %v122 = vshrl.u32 %v121, 7
      %v123 = vsub.s32 1, %v122
      %v124 = vrot.slane %v105, %v123
      %v125 = vmul.f32 %v119, %v124
      %v126 = vadd.f32 %v116, %v125
      %127 = vset.pattern.permute.xlu0 2
      %128 = vperm.xlu0 %127, %v82
      %v129 = vpop.permute.xlu0 %128
      %v131 = vlaneseq
      %v132 = vshrl.u32 %v131, 7
      %v133 = vsub.s32 2, %v132
      %v134 = vrot.slane %v105, %v133
      %v135 = vmul.f32 %v129, %v134
      %v136 = vadd.f32 %v126, %v135
      %137 = vset.pattern.permute.xlu0 3
      %138 = vperm.xlu0 %137, %v82
      %v139 = vpop.permute.xlu0 %138
      %v141 = vlaneseq
      %v142 = vshrl.u32 %v141, 7
      %v143 = vsub.s32 3, %v142
      %v144 = vrot.slane %v105, %v143
      %v145 = vmul.f32 %v139, %v144
      %v146 = vadd.f32 %v136, %v145
      %147 = vst [vmem:[#allocation6] sm:$0x3] %v146
    $region33: #{tpu_custom_call.1} parent=1 // pred_fallthru
      _
    // Predicated region
    $region34: #{tpu_custom_call.1} parent=1 // pred_check
      _
    $region35: #{tpu_custom_call.1} parent=1 // pred_check_branch
      %149 = sbr.rel (0) target = $region37
    $region36: #{tpu_custom_call.1} parent=1 // pred_region
      %s151 = ssub.s32 32, 32
      %152 = vsyncadd [#allocation5], %s151
      %s154 = sshll.u32 [#allocation6], 4
      %s155 = int_to_ptr.vmem [resolvable:$true] %s154
      %157 = dma.vmem_to_hbm [thread:$0]  %s155, 32, %s5, [#allocation5]
    $region37: #{tpu_custom_call.1} parent=1 // pred_fallthru
      _
    // Predicated region
    $region38: #{tpu_custom_call.1} parent=1 // pred_check
      _
    $region39: #{tpu_custom_call.1} parent=1 // pred_check_branch
      %159 = sbr.rel (0) target = $region41
    $region40: #{tpu_custom_call.1} parent=1 // pred_region
      %160 = dma.done [#allocation5], 32
    $region41: #{tpu_custom_call.1} parent=1 // pred_fallthru
      _
    %161 = vsyncpa [#allocation4], 1
    %162 = vsyncpa [#allocation5], 1

</llo_original>
